<compile_context>
chip_gen: v6e
topology: v6e:2x2x1
jax: 0.10.0
libtpu: 0.0.40
codegen_flags: <defaults>
</compile_context>

<pallas_src>
import jax
import jax.numpy as jnp
from jax.experimental import pallas as pl
from jax.experimental.pallas import tpu as pltpu


def _round_up(x: int, m: int) -> int:
    return ((x + m - 1) // m) * m


def _choose_tile_m(M: int, tile_m: int) -> int:
    # Multiple of 16 (bf16 sublane packing, valid for f32 too); don't blow the
    # tile far past M for tiny inputs.
    tm = max(16, min(_round_up(tile_m, 16), _round_up(M, 16)))
    # v7x megacore: prefer >= 2 grid steps so both TensorCores get a row tile.
    while tm > 256 and pl.cdiv(M, tm) < 2:
        tm = _round_up(tm // 2, 16)
    return tm


def _ffn_kernel(x_ref, w1_ref, b1_ref, w2_ref, b2_ref, o_ref):
    # x_ref:  (TM, D)  row tile of the flattened (B*L, D) input (original dtype)
    # w1_ref: (D, H)   first linear weight  (compute dtype, VMEM resident)
    # b1_ref: (1, H)   f32 bias
    # w2_ref: (H, D)   second linear weight (compute dtype, VMEM resident)
    # b2_ref: (1, D)   f32 bias
    # o_ref:  (TM, D)  output tile
    # In-kernel cast to the matmul compute dtype (no wrapper-side HBM round trip).
    x = x_ref[...].astype(w1_ref.dtype)
    # MXU matmuls with f32 accumulation; bias add + ReLU on the VPU in f32.
    h = jnp.dot(x, w1_ref[...], preferred_element_type=jnp.float32)
    h = jnp.maximum(h + b1_ref[...], 0.0)
    # TODO(synk): dropout is identity here (eval mode); training-mode dropout
    # would use pltpu.prng_seed + pltpu.stateful_bernoulli on `h`.
    y = jnp.dot(h.astype(w2_ref.dtype), w2_ref[...],
                preferred_element_type=jnp.float32)
    o_ref[...] = (y + b2_ref[...]).astype(o_ref.dtype)


def positionwise_feed_forward(xs, w1, b1, w2, b2, *, tile_m=512,
                              compute_dtype=jnp.bfloat16, out_dtype=None):
    """y = relu(xs @ w1 + b1) @ w2 + b2 per position.

    xs: (B, L, D); w1: (D, H); b1: (H,); w2: (H, D); b2: (D,).
    Weights are stored transposed relative to torch.nn.Linear.
    Set compute_dtype=jnp.float32 for exact-parity paths; out_dtype=bf16 to
    halve output writeback when downstream consumers accept it.
    """
    B, L, D = xs.shape
    H = w1.shape[1]
    M = B * L
    out_dtype = xs.dtype if out_dtype is None else out_dtype

    tm = _choose_tile_m(M, tile_m)
    grid_m = pl.cdiv(M, tm)

    # (B, L, D) -> (M, D) is a free reshape; x keeps its original dtype.
    x2d = xs.reshape(M, D)

    # Weight casts are small & one-shot; in production do this at param setup.
    w1_c = w1.astype(compute_dtype)
    w2_c = w2.astype(compute_dtype)
    b1_2d = b1.reshape(1, H).astype(jnp.float32)
    b2_2d = b2.reshape(1, D).astype(jnp.float32)

    cd = jnp.dtype(compute_dtype).itemsize
    xd = jnp.dtype(xs.dtype).itemsize
    od = jnp.dtype(out_dtype).itemsize

    # VMEM budget: double-buffered x/out tiles, single-buffered weights/biases,
    # plus the in-kernel compute-dtype copy of x, the (tm, H) f32 intermediate
    # and its compute-dtype copy feeding the second matmul.
    est = (2 * tm * D * (xd + od)            # x in + out tiles (2 bufs each)
           + tm * D * cd                     # in-kernel cast copy of x tile
           + (D * H + H * D) * cd            # w1 + w2 (single-buffered)
           + (H + D) * 4                     # biases
           + tm * H * (4 + cd))              # f32 intermediate h + cast copy
    try:
        phys_vmem = pltpu.get_tpu_info().vmem_capacity_bytes
    except Exception:
        phys_vmem = 64 * 2**20               # conservative (v7x per-TC)
    vmem_cap = (phys_vmem * 3) // 4          # leave headroom for Mosaic scratch
    vmem_limit = int(min(vmem_cap, max(16 * 2**20, est + est // 2)))

    cost = pl.CostEstimate(
        flops=4 * M * D * H,                 # two matmuls, 2*M*D*H each
        transcendentals=0,
        bytes_accessed=(M * D * (xd + od)
                        + 2 * D * H * cd + 4 * (H + D)),
    )

    out2d = pl.pallas_call(
        _ffn_kernel,
        out_shape=jax.ShapeDtypeStruct((M, D), out_dtype),
        grid_spec=pltpu.PrefetchScalarGridSpec(
            num_scalar_prefetch=0,
            grid=(grid_m,),
            in_specs=[
                pl.BlockSpec((tm, D), lambda i: (i, 0)),    # x row tile
                pl.BlockSpec((D, H), lambda i: (0, 0),
                             pipeline_mode=pl.Buffered(1)),  # w1 (resident)
                pl.BlockSpec((1, H), lambda i: (0, 0),
                             pipeline_mode=pl.Buffered(1)),  # b1
                pl.BlockSpec((H, D), lambda i: (0, 0),
                             pipeline_mode=pl.Buffered(1)),  # w2 (resident)
                pl.BlockSpec((1, D), lambda i: (0, 0),
                             pipeline_mode=pl.Buffered(1)),  # b2
            ],
            out_specs=pl.BlockSpec((tm, D), lambda i: (i, 0)),
        ),
        compiler_params=pltpu.CompilerParams(
            dimension_semantics=("parallel",),   # row tiles shard across TCs
            vmem_limit_bytes=vmem_limit,
        ),
        cost_estimate=cost,
    )(x2d, w1_c, b1_2d, w2_c, b2_2d)

    return out2d.reshape(B, L, D)


def _ref(xs, w1, b1, w2, b2):
    return jnp.maximum(xs @ w1 + b1, 0.0) @ w2 + b2


if __name__ == "__main__":
    key = jax.random.PRNGKey(0)

    # --- Case 1: small shapes matching the module (B, Lmax, idim), hidden. ---
    B, L, idim, hidden = 2, 8, 32, 64
    k_x, k_w1, k_b1, k_w2, k_b2, key = jax.random.split(key, 6)
    xs = jax.random.normal(k_x, (B, L, idim), dtype=jnp.float32)
    w1 = jax.random.normal(k_w1, (idim, hidden), dtype=jnp.float32) * 0.1
    b1 = jax.random.normal(k_b1, (hidden,), dtype=jnp.float32) * 0.1
    w2 = jax.random.normal(k_w2, (hidden, idim), dtype=jnp.float32) * 0.1
    b2 = jax.random.normal(k_b2, (idim,), dtype=jnp.float32) * 0.1

    out = positionwise_feed_forward(xs, w1, b1, w2, b2)
    jax.block_until_ready(out)
    ref = _ref(xs, w1, b1, w2, b2)
    assert out.shape == (B, L, idim)
    # bf16 operands + f32 accumulation -> loose-ish tolerance vs pure-f32 ref.
    assert jnp.allclose(out, ref, atol=3e-2, rtol=3e-2), (
        float(jnp.max(jnp.abs(out - ref))))

    # --- Case 2: multi-tile grid with a ragged (masked) last block.
    #     M = 2*150 = 300 -> tm=160 -> grid=2, last block covers 140 rows. ---
    B2, L2, idim2, hidden2 = 2, 150, 64, 128
    k_x, k_w1, k_b1, k_w2, k_b2, key = jax.random.split(key, 6)
    xs2 = jax.random.normal(k_x, (B2, L2, idim2), dtype=jnp.float32)
    w1_2 = jax.random.normal(k_w1, (idim2, hidden2), dtype=jnp.float32) * 0.1
    b1_2 = jax.random.normal(k_b1, (hidden2,), dtype=jnp.float32) * 0.1
    w2_2 = jax.random.normal(k_w2, (hidden2, idim2), dtype=jnp.float32) * 0.1
    b2_2 = jax.random.normal(k_b2, (idim2,), dtype=jnp.float32) * 0.1

    out2 = positionwise_feed_forward(xs2, w1_2, b1_2, w2_2, b2_2)
    jax.block_until_ready(out2)
    ref2 = _ref(xs2, w1_2, b1_2, w2_2, b2_2)
    assert out2.shape == (B2, L2, idim2)
    assert jnp.allclose(out2, ref2, atol=3e-2, rtol=3e-2), (
        float(jnp.max(jnp.abs(out2 - ref2))))

    # --- Case 3: f32 escape hatch for parity-critical paths. ---
    out3 = positionwise_feed_forward(xs, w1, b1, w2, b2,
                                     compute_dtype=jnp.float32)
    jax.block_until_ready(out3)
    assert jnp.allclose(out3, ref, atol=1e-5, rtol=1e-5), (
        float(jnp.max(jnp.abs(out3 - ref))))

    print("KERNEL_OK")
</pallas_src>

<mosaic_0001>
module attributes {stable_mosaic.version = 11 : i64} {
  func.func @_ffn_kernel(%arg0: i32, %arg1: memref<16x32xf32, #tpu.memory_space<vmem>>, %arg2: memref<32x64xbf16, #tpu.memory_space<vmem>>, %arg3: memref<1x64xf32, #tpu.memory_space<vmem>>, %arg4: memref<64x32xbf16, #tpu.memory_space<vmem>>, %arg5: memref<1x32xf32, #tpu.memory_space<vmem>>, %arg6: memref<16x32xf32, #tpu.memory_space<vmem>>) attributes {dimension_semantics = [#tpu.dimension_semantics<parallel>], iteration_bounds = array<i64: 1>, scalar_prefetch = 0 : i64, scratch_operands = 0 : i64, tpu.core_type = #tpu.core_type<tc>, window_params = [{transform_indices = @transform_0, window_bounds = array<i64: 16, 32>}, {pipeline_mode = #tpu.pipeline_mode<synchronous>, transform_indices = @transform_1, window_bounds = array<i64: 32, 64>}, {pipeline_mode = #tpu.pipeline_mode<synchronous>, transform_indices = @transform_2, window_bounds = array<i64: 1, 64>}, {pipeline_mode = #tpu.pipeline_mode<synchronous>, transform_indices = @transform_3, window_bounds = array<i64: 64, 32>}, {pipeline_mode = #tpu.pipeline_mode<synchronous>, transform_indices = @transform_4, window_bounds = array<i64: 1, 32>}, {transform_indices = @transform_5, window_bounds = array<i64: 16, 32>}]} {
    %c0 = arith.constant 0 : index
    %c0_0 = arith.constant 0 : index
    %0 = vector.load %arg1[%c0, %c0_0] : memref<16x32xf32, #tpu.memory_space<vmem>>, vector<16x32xf32>
    %1 = arith.truncf %0 : vector<16x32xf32> to vector<16x32xbf16>
    %c0_1 = arith.constant 0 : index
    %c0_2 = arith.constant 0 : index
    %2 = vector.load %arg2[%c0_1, %c0_2] : memref<32x64xbf16, #tpu.memory_space<vmem>>, vector<32x64xbf16>
    %cst = arith.constant dense<0.000000e+00> : vector<16x64xf32>
    %3 = tpu.matmul %1, %2, %cst {dimension_numbers = #tpu.dot_dimension_numbers<[1], [0], [0], [1], [0, 0, 1, 1], [], []>} : vector<16x32xbf16>, vector<32x64xbf16>, vector<16x64xf32> -> vector<16x64xf32>
    %c0_3 = arith.constant 0 : index
    %c0_4 = arith.constant 0 : index
    %4 = vector.load %arg3[%c0_3, %c0_4] : memref<1x64xf32, #tpu.memory_space<vmem>>, vector<1x64xf32>
    %5 = vector.broadcast %4 : vector<1x64xf32> to vector<16x64xf32>
    %6 = arith.addf %3, %5 : vector<16x64xf32>
    %cst_5 = arith.constant 0.000000e+00 : f32
    %7 = vector.broadcast %cst_5 : f32 to vector<16x64xf32>
    %8 = arith.maximumf %6, %7 : vector<16x64xf32>
    %9 = arith.truncf %8 : vector<16x64xf32> to vector<16x64xbf16>
    %c0_6 = arith.constant 0 : index
    %c0_7 = arith.constant 0 : index
    %10 = vector.load %arg4[%c0_6, %c0_7] : memref<64x32xbf16, #tpu.memory_space<vmem>>, vector<64x32xbf16>
    %cst_8 = arith.constant dense<0.000000e+00> : vector<16x32xf32>
    %11 = tpu.matmul %9, %10, %cst_8 {dimension_numbers = #tpu.dot_dimension_numbers<[1], [0], [0], [1], [0, 0, 1, 1], [], []>} : vector<16x64xbf16>, vector<64x32xbf16>, vector<16x32xf32> -> vector<16x32xf32>
    %c0_9 = arith.constant 0 : index
    %c0_10 = arith.constant 0 : index
    %12 = vector.load %arg5[%c0_9, %c0_10] : memref<1x32xf32, #tpu.memory_space<vmem>>, vector<1x32xf32>
    %13 = vector.broadcast %12 : vector<1x32xf32> to vector<16x32xf32>
    %14 = arith.addf %11, %13 : vector<16x32xf32>
    %c0_11 = arith.constant 0 : index
    %c0_12 = arith.constant 0 : index
    %15 = vector.load %arg6[%c0_11, %c0_12] : memref<16x32xf32, #tpu.memory_space<vmem>>, vector<16x32xf32>
    tpu.vector_store %arg6[%c0_11, %c0_12], %14 {strides = array<i32>} : memref<16x32xf32, #tpu.memory_space<vmem>>, vector<16x32xf32>,
    return
  }
  func.func @transform_0(%arg0: i32) -> (i32, i32) {
    %c0_i32 = arith.constant 0 : i32
    %c0_i32_0 = arith.constant 0 : i32
    return %arg0, %c0_i32 : i32, i32
  }
  func.func @transform_1(%arg0: i32) -> (i32, i32) {
    %c0_i32 = arith.constant 0 : i32
    %c0_i32_0 = arith.constant 0 : i32
    %c0_i32_1 = arith.constant 0 : i32
    return %c0_i32, %c0_i32_0 : i32, i32
  }
  func.func @transform_2(%arg0: i32) -> (i32, i32) {
    %c0_i32 = arith.constant 0 : i32
    %c0_i32_0 = arith.constant 0 : i32
    %c0_i32_1 = arith.constant 0 : i32
    return %c0_i32, %c0_i32_0 : i32, i32
  }
  func.func @transform_3(%arg0: i32) -> (i32, i32) {
    %c0_i32 = arith.constant 0 : i32
    %c0_i32_0 = arith.constant 0 : i32
    %c0_i32_1 = arith.constant 0 : i32
    return %c0_i32, %c0_i32_0 : i32, i32
  }
  func.func @transform_4(%arg0: i32) -> (i32, i32) {
    %c0_i32 = arith.constant 0 : i32
    %c0_i32_0 = arith.constant 0 : i32
    %c0_i32_1 = arith.constant 0 : i32
    return %c0_i32, %c0_i32_0 : i32, i32
  }
  func.func @transform_5(%arg0: i32) -> (i32, i32) {
    %c0_i32 = arith.constant 0 : i32
    %c0_i32_0 = arith.constant 0 : i32
    return %arg0, %c0_i32 : i32, i32
  }
}

</mosaic_0001>

<llo_original>
// kernel: tpu_custom_call.1
$region0: #{tpu_custom_call.1}
  #allocation0 [shape = 'u32[]', space=smem, size = 0x4, offset = 0x4, fixed_abs, tag = 'smem constant byte address 0x4 - core index']
  #allocation1 [shape = 'u32[144,128]{1,0:T(1,128)}', space=vmem, size = 0x12000, scoped, tag = 'internal scratch']
  %s0 = inlined_call_operand.vmem [shape: f32[16,32], index: 0, kind: input, shape index: {}]
  %s1 = inlined_call_operand.vmem [shape: bf16[32,64], index: 1, kind: input, shape index: {}]
  %s2 = inlined_call_operand.vmem [shape: f32[1,64], index: 2, kind: input, shape index: {}]
  %s3 = inlined_call_operand.vmem [shape: bf16[64,32], index: 3, kind: input, shape index: {}]
  %s4 = inlined_call_operand.vmem [shape: f32[1,32], index: 4, kind: input, shape index: {}]
  %s5 = inlined_call_operand.hbm [shape: f32[16,32], index: 5, kind: output, shape index: {}]
  %s6 = sld [smem:[#allocation0]]
  $region30: #{tpu_custom_call.1} parent=0
    _
  %s8 = ssub.s32 1, %s6
  %s9 = scalar_select 0, %s8, %s6
  $region1: #{tpu_custom_call.1} parent=0
    #allocation2 [shape = 'u8[8192]{0}', space=vmem, size = 0x2000, scoped, tag = 'output window, operand 0, single buffered']
    #allocation3 [shape = 's32[1]{0}', space=sflag, size = 0x4, scoped, tag = 'scoped memory for tpu_custom_call.1']
    %10 = vsyncpa [#allocation3], 0
    // Predicated region
    $region2: #{tpu_custom_call.1} parent=1 // pred_check
      _
    $region3: #{tpu_custom_call.1} parent=1 // pred_check_branch
      %12 = sbr.rel (0) target = $region5
    $region4: #{tpu_custom_call.1} parent=1 // pred_region
      _
    $region5: #{tpu_custom_call.1} parent=1 // pred_fallthru
      _
    // Predicated region
    $region6: #{tpu_custom_call.1} parent=1 // pred_check
      _
    $region7: #{tpu_custom_call.1} parent=1 // pred_check_branch
      %14 = sbr.rel (0) target = $region9
    $region8: #{tpu_custom_call.1} parent=1 // pred_region
      _
    $region9: #{tpu_custom_call.1} parent=1 // pred_fallthru
      _
    // Predicated region
    $region10: #{tpu_custom_call.1} parent=1 // pred_check
      _
    $region11: #{tpu_custom_call.1} parent=1 // pred_check_branch
      %16 = sbr.rel (0) target = $region13
    $region12: #{tpu_custom_call.1} parent=1 // pred_region
      _
    $region13: #{tpu_custom_call.1} parent=1 // pred_fallthru
      _
    // Predicated region
    $region14: #{tpu_custom_call.1} parent=1 // pred_check
      _
    $region15: #{tpu_custom_call.1} parent=1 // pred_check_branch
      %18 = sbr.rel (0) target = $region17
    $region16: #{tpu_custom_call.1} parent=1 // pred_region
      _
    $region17: #{tpu_custom_call.1} parent=1 // pred_fallthru
      _
    // Predicated region
    $region18: #{tpu_custom_call.1} parent=1 // pred_check
      _
    $region19: #{tpu_custom_call.1} parent=1 // pred_check_branch
      %20 = sbr.rel (0) target = $region21
    $region20: #{tpu_custom_call.1} parent=1 // pred_region
      _
    $region21: #{tpu_custom_call.1} parent=1 // pred_fallthru
      _
    %v22 = vld [vmem:[%s0] sm:$0xff]
    %v23 = vld [vmem:[%s0 + $0x8] sm:$0xff]
    %v24 = vpack.c.bf16 %v23, %v22
    %v25 = vld [vmem:[%s1] sm:$0xf]
    %v26 = vld [vmem:[%s1 + $0x4] sm:$0xf]
    %v27 = vld [vmem:[%s1 + $0x8] sm:$0xf]
    %v28 = vld [vmem:[%s1 + $0xc] sm:$0xf]
    %v29 = vld [vmem:[%s2] sm:$0x1]
    %v31 = vlaneseq
    %v32 = vshrl.u32 %v31, 7
    %v33 = vsub.s32 0, %v32
    %v34 = vrot.slane %v29, %v33
    %v40 = vunpack.c.l.b16 %v25
    %v41 = vunpack.c.l.b16 %v26
    %v42 = vunpack.c.l.b16 %v27
    %v43 = vunpack.c.l.b16 %v28
    %v44 = vpack.c.b16 %v41, %v40
    %v45 = vpack.c.b16 %v43, %v42
    %vm48 = vcmask 261120
    %v50 = vsel %vm48, %v24, 0
    %52 = vmatprep.subr.bf16.mxu0 0
    %53 = vmatpush1.bf16.msra.mxu0 0
    %54 = vmatprep.subr.bf16.mxu0 0
    %55 = vmatpush1.bf16.msra.mxu0 0
    %56 = vmatprep.subr.bf16.mxu0 0
    %57 = vmatpush1.bf16.msra.mxu0 0
    %58 = vmatprep.subr.bf16.mxu0 0
    %59 = vmatpush1.bf16.msra.mxu0 0
    %60 = vmatprep.subr.bf16.mxu0 0
    %61 = vmatpush1.bf16.msra.mxu0 0
    %62 = vmatprep.subr.bf16.mxu0 0
    %63 = vmatpush1.bf16.msra.mxu0 0
    %64 = vmatprep.subr.bf16.mxu0 0
    %65 = vmatpush1.bf16.msra.mxu0 %v45
    %66 = vmatprep.subr.bf16.mxu0 0
    %67 = vmatpush1.bf16.msra.mxu0 %v44
    %68 = vmatprep.subr.bf16.mxu0 0
    %69 = vmatpush2.bf16.msra.mxu0 0
    %70 = vmatprep.subr.bf16.mxu0 0
    %71 = vmatpush2.bf16.msra.mxu0 0
    %72 = vmatprep.subr.bf16.mxu0 0
    %73 = vmatpush2.bf16.msra.mxu0 0
    %74 = vmatprep.subr.bf16.mxu0 0
    %75 = vmatpush2.bf16.msra.mxu0 0
    %76 = vmatprep.subr.bf16.mxu0 0
    %77 = vmatpush2.bf16.msra.mxu0 0
    %78 = vmatprep.subr.bf16.mxu0 0
    %79 = vmatpush2.bf16.msra.mxu0 0
    %80 = vmatprep.subr.bf16.mxu0 0
    %81 = vmatpush2.bf16.msra.mxu0 0
    %82 = vmatprep.subr.bf16.mxu0 0
    %83 = vmatpush2.bf16.msra.mxu0 0
    %84 = vmatprep.mubr.bf16.mxu0 0
    %85 = vmatmul.mubr.bf16.gmra.mxu0 %v50
    %v86 = vpop.f32.mrf.mxu0
    %v87 = vadd.f32 %v34, %v86
    %v88 = vpop.f32.mrf.mxu0
    %v89 = vpop.f32.mrf.mxu0
    %v90 = vadd.f32 %v34, %v89
    %v91 = vpop.f32.mrf.mxu0
    %92 = vdwg.mxu0
    %v93 = vmax.f32 %v87, 0.0
    %v94 = vmax.f32 %v90, 0.0
    %v95 = vpack.c.bf16 %v94, %v93
    %v96 = vld [vmem:[%s3] sm:$0xf]
    %v97 = vld [vmem:[%s3 + $0x4] sm:$0xf]
    %v98 = vld [vmem:[%s3 + $0x8] sm:$0xf]
    %v99 = vld [vmem:[%s3 + $0xc] sm:$0xf]
    %v100 = vld [vmem:[%s3 + $0x10] sm:$0xf]
    %v101 = vld [vmem:[%s3 + $0x14] sm:$0xf]
    %v102 = vld [vmem:[%s3 + $0x18] sm:$0xf]
    %v103 = vld [vmem:[%s3 + $0x1c] sm:$0xf]
    %v104 = vld [vmem:[%s4] sm:$0x1]
    %v106 = vlaneseq
    %v107 = vshrl.u32 %v106, 7
    %v108 = vsub.s32 0, %v107
    %v109 = vrot.slane %v104, %v108
    %v119 = vunpack.c.l.b16 %v96
    %v120 = vunpack.c.l.b16 %v97
    %v121 = vunpack.c.l.b16 %v98
    %v122 = vunpack.c.l.b16 %v99
    %v123 = vunpack.c.l.b16 %v100
    %v124 = vunpack.c.l.b16 %v101
    %v125 = vunpack.c.l.b16 %v102
    %v126 = vunpack.c.l.b16 %v103
    %v127 = vpack.c.b16 %v120, %v119
    %v128 = vpack.c.b16 %v122, %v121
    %v129 = vpack.c.b16 %v124, %v123
    %v130 = vpack.c.b16 %v126, %v125
    %vm135 = vcmask 523264
    %v137 = vsel %vm135, %v95, 0
    %139 = vmatprep.subr.bf16.mxu0 0
    %140 = vmatpush1.bf16.msra.mxu0 0
    %141 = vmatprep.subr.bf16.mxu0 0
    %142 = vmatpush1.bf16.msra.mxu0 0
    %143 = vmatprep.subr.bf16.mxu0 0
    %144 = vmatpush1.bf16.msra.mxu0 0
    %145 = vmatprep.subr.bf16.mxu0 0
    %146 = vmatpush1.bf16.msra.mxu0 0
    %147 = vmatprep.subr.bf16.mxu0 0
    %148 = vmatpush1.bf16.msra.mxu0 %v130
    %149 = vmatprep.subr.bf16.mxu0 0
    %150 = vmatpush1.bf16.msra.mxu0 %v129
    %151 = vmatprep.subr.bf16.mxu0 0
    %152 = vmatpush1.bf16.msra.mxu0 %v128
    %153 = vmatprep.subr.bf16.mxu0 0
    %154 = vmatpush1.bf16.msra.mxu0 %v127
    %155 = vmatprep.subr.bf16.mxu0 0
    %156 = vmatpush2.bf16.msra.mxu0 0
    %157 = vmatprep.subr.bf16.mxu0 0
    %158 = vmatpush2.bf16.msra.mxu0 0
    %159 = vmatprep.subr.bf16.mxu0 0
    %160 = vmatpush2.bf16.msra.mxu0 0
    %161 = vmatprep.subr.bf16.mxu0 0
    %162 = vmatpush2.bf16.msra.mxu0 0
    %163 = vmatprep.subr.bf16.mxu0 0
    %164 = vmatpush2.bf16.msra.mxu0 0
    %165 = vmatprep.subr.bf16.mxu0 0
    %166 = vmatpush2.bf16.msra.mxu0 0
    %167 = vmatprep.subr.bf16.mxu0 0
    %168 = vmatpush2.bf16.msra.mxu0 0
    %169 = vmatprep.subr.bf16.mxu0 0
    %170 = vmatpush2.bf16.msra.mxu0 0
    %171 = vmatprep.mubr.bf16.mxu0 0
    %172 = vmatmul.mubr.bf16.gmra.mxu0 %v137
    %v173 = vpop.f32.mrf.mxu0
    %v174 = vadd.f32 %v109, %v173
    %v175 = vpop.f32.mrf.mxu0
    %v176 = vpop.f32.mrf.mxu0
    %v177 = vadd.f32 %v109, %v176
    %v178 = vpop.f32.mrf.mxu0
    %179 = vdwg.mxu0
    %180 = vst.msk [vmem:[#allocation2] sm:$0xff] %vm48, %v174
    %181 = vst.msk [vmem:[#allocation2 + $0x8] sm:$0xff] %vm48, %v177
    // Predicated region
    $region22: #{tpu_custom_call.1} parent=1 // pred_check
      _
    $region23: #{tpu_custom_call.1} parent=1 // pred_check_branch
      %183 = sbr.rel (0) target = $region25
    $region24: #{tpu_custom_call.1} parent=1 // pred_region
      %s185 = ssub.s32 256, 256
      %186 = vsyncadd [#allocation3], %s185
      %s187 = sshll.u32 [#allocation2], 4
      %s188 = int_to_ptr.vmem [resolvable:$true] %s187
      %193 = dma.vmem_to_hbm [thread:$0]  %s188, 256, %s5, [#allocation3], 128, 128, 8
    $region25: #{tpu_custom_call.1} parent=1 // pred_fallthru
      _
    // Predicated region
    $region26: #{tpu_custom_call.1} parent=1 // pred_check
      _
    $region27: #{tpu_custom_call.1} parent=1 // pred_check_branch
      %195 = sbr.rel (0) target = $region29
    $region28: #{tpu_custom_call.1} parent=1 // pred_region
      %196 = dma.done [#allocation3], 256
    $region29: #{tpu_custom_call.1} parent=1 // pred_fallthru
      _
    %197 = vsyncpa [#allocation3], 1

</llo_original>
